<compile_context>
chip_gen: v5e
topology: v5e:2x2
jax: 0.10.0
libtpu: 0.0.40
codegen_flags: <defaults>
</compile_context>

<pallas_src>
import jax
import jax.numpy as jnp
from jax.experimental import pallas as pl
from jax.experimental.pallas import tpu as pltpu


def _leaky_relu(h, slope=0.2):
    return jnp.where(h > 0, h, slope * h)


def discriminator_kernel(x_ref,
                         w1_ref, b1_ref,
                         w2_ref, b2_ref,
                         w3_ref, b3_ref,
                         w4_ref, b4_ref,
                         out_ref):
    # x / weights are bf16 MXU operands; accumulation, bias-add and LeakyReLU
    # stay in f32 (v5e has no bf16 VPU/EUP).
    x = x_ref[...]

    # Layer 1: Linear + LeakyReLU (Dropout = identity in eval mode).
    h = jnp.dot(x, w1_ref[...], preferred_element_type=jnp.float32) + b1_ref[...]
    h = _leaky_relu(h)

    # Layer 2.
    h = jnp.dot(h.astype(w2_ref.dtype), w2_ref[...],
                preferred_element_type=jnp.float32) + b2_ref[...]
    h = _leaky_relu(h)

    # Layer 3.
    h = jnp.dot(h.astype(w3_ref.dtype), w3_ref[...],
                preferred_element_type=jnp.float32) + b3_ref[...]
    h = _leaky_relu(h)

    # Layer 4: block-diag (hw, pack) matmul -> dense (tile_rows, pack) block.
    out = jnp.dot(h.astype(w4_ref.dtype), w4_ref[...],
                  preferred_element_type=jnp.float32) + b4_ref[...]
    out_ref[...] = out.astype(out_ref.dtype)


def _block_diag(w, p):
    """[in, out] -> [p*in, p*out] block-diagonal with p copies of w."""
    if p == 1:
        return w
    return jnp.kron(jnp.eye(p, dtype=w.dtype), w)


def _round_up(n, m):
    return ((n + m - 1) // m) * m


def discriminator_forward(x, params, *, tile_b=65536, mxu_dtype=jnp.bfloat16):
    """x: [B, sign_dim] float32. params: weights [in, out], biases [1, out]."""
    B, sign_dim = x.shape
    H = params["w1"].shape[1]

    # ---- batch-lane packing factor (8 for sign_dim=16 -> packed width 128) ----
    pack = max(1, min(8, 128 // max(sign_dim, 1))) if sign_dim <= 128 else 1
    xw = pack * sign_dim          # packed input width  (128 for sign_dim=16)
    hw = pack * H                 # packed hidden width (256)

    # Pad batch to a multiple of the packing factor, then pack rows into lanes.
    B1 = _round_up(B, pack)
    if B1 != B:
        x = jnp.pad(x, ((0, B1 - B), (0, 0)))
    R = B1 // pack                # packed rows
    xp = x.reshape(R, xw)

    # ---- tile size: ~2 MiB of packed bf16 x per grid step, but clamp to
    #      ~half the batch so num_tiles >= 2 feeds both v7x TensorCores. ----
    default_rows = max(8, (tile_b // pack) // 8 * 8)
    half_rows = max(8, _round_up(-(-R // 2), 8))
    tile_rows = min(default_rows, half_rows)
    num_tiles = -(-R // tile_rows)
    R_pad = num_tiles * tile_rows
    if R_pad != R:
        xp = jnp.pad(xp, ((0, R_pad - R), (0, 0)))
    xp = xp.astype(mxu_dtype)

    # ---- block-diagonal packed parameters (bf16 MXU operands, f32 biases) ----
    w1 = _block_diag(params["w1"], pack).astype(mxu_dtype)   # (xw, hw)
    w2 = _block_diag(params["w2"], pack).astype(mxu_dtype)   # (hw, hw)
    w3 = _block_diag(params["w3"], pack).astype(mxu_dtype)   # (hw, hw)
    w4 = _block_diag(params["w4"], pack).astype(mxu_dtype)   # (hw, pack)
    b1 = jnp.tile(params["b1"].reshape(1, H), (1, pack)).astype(jnp.float32)
    b2 = jnp.tile(params["b2"].reshape(1, H), (1, pack)).astype(jnp.float32)
    b3 = jnp.tile(params["b3"].reshape(1, H), (1, pack)).astype(jnp.float32)
    b4 = jnp.tile(params["b4"].reshape(1, 1), (1, pack)).astype(jnp.float32)

    in_specs = [
        pl.BlockSpec((tile_rows, xw), lambda i: (i, 0)),   # x: tiled over packed batch
        pl.BlockSpec((xw, hw), lambda i: (0, 0)),          # w1 (resident in VMEM)
        pl.BlockSpec((1, hw), lambda i: (0, 0)),           # b1
        pl.BlockSpec((hw, hw), lambda i: (0, 0)),          # w2
        pl.BlockSpec((1, hw), lambda i: (0, 0)),           # b2
        pl.BlockSpec((hw, hw), lambda i: (0, 0)),          # w3
        pl.BlockSpec((1, hw), lambda i: (0, 0)),           # b3
        pl.BlockSpec((hw, pack), lambda i: (0, 0)),        # w4 (block-diag)
        pl.BlockSpec((1, pack), lambda i: (0, 0)),         # b4
    ]
    out_spec = pl.BlockSpec((tile_rows, pack), lambda i: (i, 0))

    out = pl.pallas_call(
        discriminator_kernel,
        out_shape=jax.ShapeDtypeStruct((R_pad, pack), jnp.float32),
        grid=(num_tiles,),
        in_specs=in_specs,
        out_specs=out_spec,
        compiler_params=pltpu.CompilerParams(
            dimension_semantics=("parallel",)),
    )(xp, w1, b1, w2, b2, w3, b3, w4, b4)

    # Unpack lanes back to rows: original row g*pack + r lives at out[g, r].
    return out.reshape(R_pad * pack, 1)[:B]


def init_params(key, sign_dim, hidden=32):
    """Deterministic synthetic parameters with the module's shapes.

    PyTorch nn.Linear(in, out) has weight [out, in]; we store the transpose
    [in, out] so the math is x @ W + b.
    """
    ks = jax.random.split(key, 8)

    def lin(kw, kb, fan_in, fan_out):
        bound = 1.0 / jnp.sqrt(fan_in)
        w = jax.random.uniform(kw, (fan_in, fan_out), jnp.float32, -bound, bound)
        b = jax.random.uniform(kb, (1, fan_out), jnp.float32, -bound, bound)
        return w, b

    w1, b1 = lin(ks[0], ks[1], sign_dim, hidden)
    w2, b2 = lin(ks[2], ks[3], hidden, hidden)
    w3, b3 = lin(ks[4], ks[5], hidden, hidden)
    w4, b4 = lin(ks[6], ks[7], hidden, 1)
    return dict(w1=w1, b1=b1, w2=w2, b2=b2, w3=w3, b3=b3, w4=w4, b4=b4)


def reference_forward(x, p):
    h = _leaky_relu(x @ p["w1"] + p["b1"])
    h = _leaky_relu(h @ p["w2"] + p["b2"])
    h = _leaky_relu(h @ p["w3"] + p["b3"])
    return h @ p["w4"] + p["b4"]


if __name__ == "__main__":
    key = jax.random.PRNGKey(0)
    k_x, k_p, k_x2 = jax.random.split(key, 3)

    batch, sign_dim = 8, 16
    x = jax.random.normal(k_x, (batch, sign_dim), jnp.float32)
    params = init_params(k_p, sign_dim)

    out = jax.block_until_ready(discriminator_forward(x, params))
    ref = reference_forward(x, params)
    assert out.shape == (batch, 1), out.shape
    # bf16 MXU operands with f32 accumulation -> loosened tolerance vs f32 ref.
    assert jnp.allclose(out, ref, atol=5e-2, rtol=5e-2), (out, ref)

    # Multi-tile grid + packing/padding path (B not a multiple of pack*tile).
    x2 = jax.random.normal(k_x2, (300, sign_dim), jnp.float32)
    out2 = jax.block_until_ready(discriminator_forward(x2, params, tile_b=256))
    ref2 = reference_forward(x2, params)
    assert out2.shape == (300, 1), out2.shape
    assert jnp.allclose(out2, ref2, atol=5e-2, rtol=5e-2)

    print("KERNEL_OK")
</pallas_src>

<mosaic_0001>
module attributes {stable_mosaic.version = 11 : i64} {
  func.func @discriminator_kernel(%arg0: i32, %arg1: memref<8x128xbf16, #tpu.memory_space<vmem>>, %arg2: memref<128x256xbf16, #tpu.memory_space<vmem>>, %arg3: memref<1x256xf32, #tpu.memory_space<vmem>>, %arg4: memref<256x256xbf16, #tpu.memory_space<vmem>>, %arg5: memref<1x256xf32, #tpu.memory_space<vmem>>, %arg6: memref<256x256xbf16, #tpu.memory_space<vmem>>, %arg7: memref<1x256xf32, #tpu.memory_space<vmem>>, %arg8: memref<256x8xbf16, #tpu.memory_space<vmem>>, %arg9: memref<1x8xf32, #tpu.memory_space<vmem>>, %arg10: memref<8x8xf32, #tpu.memory_space<vmem>>) attributes {dimension_semantics = [#tpu.dimension_semantics<parallel>], iteration_bounds = array<i64: 1>, scalar_prefetch = 0 : i64, scratch_operands = 0 : i64, tpu.core_type = #tpu.core_type<tc>, window_params = [{transform_indices = @transform_0, window_bounds = array<i64: 8, 128>}, {pipeline_mode = #tpu.pipeline_mode<synchronous>, transform_indices = @transform_1, window_bounds = array<i64: 128, 256>}, {pipeline_mode = #tpu.pipeline_mode<synchronous>, transform_indices = @transform_2, window_bounds = array<i64: 1, 256>}, {pipeline_mode = #tpu.pipeline_mode<synchronous>, transform_indices = @transform_3, window_bounds = array<i64: 256, 256>}, {pipeline_mode = #tpu.pipeline_mode<synchronous>, transform_indices = @transform_4, window_bounds = array<i64: 1, 256>}, {pipeline_mode = #tpu.pipeline_mode<synchronous>, transform_indices = @transform_5, window_bounds = array<i64: 256, 256>}, {pipeline_mode = #tpu.pipeline_mode<synchronous>, transform_indices = @transform_6, window_bounds = array<i64: 1, 256>}, {pipeline_mode = #tpu.pipeline_mode<synchronous>, transform_indices = @transform_7, window_bounds = array<i64: 256, 8>}, {pipeline_mode = #tpu.pipeline_mode<synchronous>, transform_indices = @transform_8, window_bounds = array<i64: 1, 8>}, {transform_indices = @transform_9, window_bounds = array<i64: 8, 8>}]} {
    %c0 = arith.constant 0 : index
    %c0_0 = arith.constant 0 : index
    %0 = vector.load %arg1[%c0, %c0_0] : memref<8x128xbf16, #tpu.memory_space<vmem>>, vector<8x128xbf16>
    %c0_1 = arith.constant 0 : index
    %c0_2 = arith.constant 0 : index
    %1 = vector.load %arg2[%c0_1, %c0_2] : memref<128x256xbf16, #tpu.memory_space<vmem>>, vector<128x256xbf16>
    %cst = arith.constant dense<0.000000e+00> : vector<8x256xf32>
    %2 = tpu.matmul %0, %1, %cst {dimension_numbers = #tpu.dot_dimension_numbers<[1], [0], [0], [1], [0, 0, 1, 1], [], []>} : vector<8x128xbf16>, vector<128x256xbf16>, vector<8x256xf32> -> vector<8x256xf32>
    %c0_3 = arith.constant 0 : index
    %c0_4 = arith.constant 0 : index
    %3 = vector.load %arg3[%c0_3, %c0_4] : memref<1x256xf32, #tpu.memory_space<vmem>>, vector<1x256xf32>
    %4 = vector.broadcast %3 : vector<1x256xf32> to vector<8x256xf32>
    %5 = arith.addf %2, %4 : vector<8x256xf32>
    %cst_5 = arith.constant 0.000000e+00 : f32
    %6 = vector.broadcast %cst_5 : f32 to vector<8x256xf32>
    %7 = arith.cmpf ogt, %5, %6 : vector<8x256xf32>
    %cst_6 = arith.constant 2.000000e-01 : f32
    %8 = vector.broadcast %cst_6 : f32 to vector<8x256xf32>
    %9 = arith.mulf %8, %5 : vector<8x256xf32>
    %10 = arith.select %7, %5, %9 : vector<8x256xi1>, vector<8x256xf32>
    %11 = arith.truncf %10 : vector<8x256xf32> to vector<8x256xbf16>
    %c0_7 = arith.constant 0 : index
    %c0_8 = arith.constant 0 : index
    %12 = vector.load %arg4[%c0_7, %c0_8] : memref<256x256xbf16, #tpu.memory_space<vmem>>, vector<256x256xbf16>
    %cst_9 = arith.constant dense<0.000000e+00> : vector<8x256xf32>
    %13 = tpu.matmul %11, %12, %cst_9 {dimension_numbers = #tpu.dot_dimension_numbers<[1], [0], [0], [1], [0, 0, 1, 1], [], []>} : vector<8x256xbf16>, vector<256x256xbf16>, vector<8x256xf32> -> vector<8x256xf32>
    %c0_10 = arith.constant 0 : index
    %c0_11 = arith.constant 0 : index
    %14 = vector.load %arg5[%c0_10, %c0_11] : memref<1x256xf32, #tpu.memory_space<vmem>>, vector<1x256xf32>
    %15 = vector.broadcast %14 : vector<1x256xf32> to vector<8x256xf32>
    %16 = arith.addf %13, %15 : vector<8x256xf32>
    %cst_12 = arith.constant 0.000000e+00 : f32
    %17 = vector.broadcast %cst_12 : f32 to vector<8x256xf32>
    %18 = arith.cmpf ogt, %16, %17 : vector<8x256xf32>
    %cst_13 = arith.constant 2.000000e-01 : f32
    %19 = vector.broadcast %cst_13 : f32 to vector<8x256xf32>
    %20 = arith.mulf %19, %16 : vector<8x256xf32>
    %21 = arith.select %18, %16, %20 : vector<8x256xi1>, vector<8x256xf32>
    %22 = arith.truncf %21 : vector<8x256xf32> to vector<8x256xbf16>
    %c0_14 = arith.constant 0 : index
    %c0_15 = arith.constant 0 : index
    %23 = vector.load %arg6[%c0_14, %c0_15] : memref<256x256xbf16, #tpu.memory_space<vmem>>, vector<256x256xbf16>
    %cst_16 = arith.constant dense<0.000000e+00> : vector<8x256xf32>
    %24 = tpu.matmul %22, %23, %cst_16 {dimension_numbers = #tpu.dot_dimension_numbers<[1], [0], [0], [1], [0, 0, 1, 1], [], []>} : vector<8x256xbf16>, vector<256x256xbf16>, vector<8x256xf32> -> vector<8x256xf32>
    %c0_17 = arith.constant 0 : index
    %c0_18 = arith.constant 0 : index
    %25 = vector.load %arg7[%c0_17, %c0_18] : memref<1x256xf32, #tpu.memory_space<vmem>>, vector<1x256xf32>
    %26 = vector.broadcast %25 : vector<1x256xf32> to vector<8x256xf32>
    %27 = arith.addf %24, %26 : vector<8x256xf32>
    %cst_19 = arith.constant 0.000000e+00 : f32
    %28 = vector.broadcast %cst_19 : f32 to vector<8x256xf32>
    %29 = arith.cmpf ogt, %27, %28 : vector<8x256xf32>
    %cst_20 = arith.constant 2.000000e-01 : f32
    %30 = vector.broadcast %cst_20 : f32 to vector<8x256xf32>
    %31 = arith.mulf %30, %27 : vector<8x256xf32>
    %32 = arith.select %29, %27, %31 : vector<8x256xi1>, vector<8x256xf32>
    %33 = arith.truncf %32 : vector<8x256xf32> to vector<8x256xbf16>
    %c0_21 = arith.constant 0 : index
    %c0_22 = arith.constant 0 : index
    %34 = vector.load %arg8[%c0_21, %c0_22] : memref<256x8xbf16, #tpu.memory_space<vmem>>, vector<256x8xbf16>
    %cst_23 = arith.constant dense<0.000000e+00> : vector<8x8xf32>
    %35 = tpu.matmul %33, %34, %cst_23 {dimension_numbers = #tpu.dot_dimension_numbers<[1], [0], [0], [1], [0, 0, 1, 1], [], []>} : vector<8x256xbf16>, vector<256x8xbf16>, vector<8x8xf32> -> vector<8x8xf32>
    %c0_24 = arith.constant 0 : index
    %c0_25 = arith.constant 0 : index
    %36 = vector.load %arg9[%c0_24, %c0_25] : memref<1x8xf32, #tpu.memory_space<vmem>>, vector<1x8xf32>
    %37 = vector.broadcast %36 : vector<1x8xf32> to vector<8x8xf32>
    %38 = arith.addf %35, %37 : vector<8x8xf32>
    %c0_26 = arith.constant 0 : index
    %c0_27 = arith.constant 0 : index
    %39 = vector.load %arg10[%c0_26, %c0_27] : memref<8x8xf32, #tpu.memory_space<vmem>>, vector<8x8xf32>
    tpu.vector_store %arg10[%c0_26, %c0_27], %38 {strides = array<i32>} : memref<8x8xf32, #tpu.memory_space<vmem>>, vector<8x8xf32>,
    return
  }
  func.func @transform_0(%arg0: i32) -> (i32, i32) {
    %c0_i32 = arith.constant 0 : i32
    %c0_i32_0 = arith.constant 0 : i32
    return %arg0, %c0_i32 : i32, i32
  }
  func.func @transform_1(%arg0: i32) -> (i32, i32) {
    %c0_i32 = arith.constant 0 : i32
    %c0_i32_0 = arith.constant 0 : i32
    %c0_i32_1 = arith.constant 0 : i32
    return %c0_i32, %c0_i32_0 : i32, i32
  }
  func.func @transform_2(%arg0: i32) -> (i32, i32) {
    %c0_i32 = arith.constant 0 : i32
    %c0_i32_0 = arith.constant 0 : i32
    %c0_i32_1 = arith.constant 0 : i32
    return %c0_i32, %c0_i32_0 : i32, i32
  }
  func.func @transform_3(%arg0: i32) -> (i32, i32) {
    %c0_i32 = arith.constant 0 : i32
    %c0_i32_0 = arith.constant 0 : i32
    %c0_i32_1 = arith.constant 0 : i32
    return %c0_i32, %c0_i32_0 : i32, i32
  }
  func.func @transform_4(%arg0: i32) -> (i32, i32) {
    %c0_i32 = arith.constant 0 : i32
    %c0_i32_0 = arith.constant 0 : i32
    %c0_i32_1 = arith.constant 0 : i32
    return %c0_i32, %c0_i32_0 : i32, i32
  }
  func.func @transform_5(%arg0: i32) -> (i32, i32) {
    %c0_i32 = arith.constant 0 : i32
    %c0_i32_0 = arith.constant 0 : i32
    %c0_i32_1 = arith.constant 0 : i32
    return %c0_i32, %c0_i32_0 : i32, i32
  }
  func.func @transform_6(%arg0: i32) -> (i32, i32) {
    %c0_i32 = arith.constant 0 : i32
    %c0_i32_0 = arith.constant 0 : i32
    %c0_i32_1 = arith.constant 0 : i32
    return %c0_i32, %c0_i32_0 : i32, i32
  }
  func.func @transform_7(%arg0: i32) -> (i32, i32) {
    %c0_i32 = arith.constant 0 : i32
    %c0_i32_0 = arith.constant 0 : i32
    %c0_i32_1 = arith.constant 0 : i32
    return %c0_i32, %c0_i32_0 : i32, i32
  }
  func.func @transform_8(%arg0: i32) -> (i32, i32) {
    %c0_i32 = arith.constant 0 : i32
    %c0_i32_0 = arith.constant 0 : i32
    %c0_i32_1 = arith.constant 0 : i32
    return %c0_i32, %c0_i32_0 : i32, i32
  }
  func.func @transform_9(%arg0: i32) -> (i32, i32) {
    %c0_i32 = arith.constant 0 : i32
    %c0_i32_0 = arith.constant 0 : i32
    return %arg0, %c0_i32 : i32, i32
  }
}

</mosaic_0001>

<llo_original>
// kernel: tpu_custom_call.1
$region0: #{tpu_custom_call.1}
  #allocation0 [shape = 'u32[]', space=smem, size = 0x4, offset = 0x4, fixed_abs, tag = 'smem constant byte address 0x4 - core index']
  #allocation1 [shape = 'u32[72,128]{1,0:T(1,128)}', space=vmem, size = 0x9000, scoped, tag = 'internal scratch']
  %s0 = inlined_call_operand.vmem [shape: bf16[8,128], index: 0, kind: input, shape index: {}]
  %s1 = inlined_call_operand.vmem [shape: bf16[128,256], index: 1, kind: input, shape index: {}]
  %s2 = inlined_call_operand.vmem [shape: f32[1,256], index: 2, kind: input, shape index: {}]
  %s3 = inlined_call_operand.hbm [shape: bf16[256,256], index: 3, kind: input, shape index: {}]
  %s4 = inlined_call_operand.vmem [shape: f32[1,256], index: 4, kind: input, shape index: {}]
  %s5 = inlined_call_operand.hbm [shape: bf16[256,256], index: 5, kind: input, shape index: {}]
  %s6 = inlined_call_operand.vmem [shape: f32[1,256], index: 6, kind: input, shape index: {}]
  %s7 = inlined_call_operand.vmem [shape: bf16[256,8], index: 7, kind: input, shape index: {}]
  %s8 = inlined_call_operand.vmem [shape: f32[1,8], index: 8, kind: input, shape index: {}]
  %s9 = inlined_call_operand.hbm [shape: f32[8,8], index: 9, kind: output, shape index: {}]
  %s10 = sld [smem:[#allocation0]]
  $region54: #{tpu_custom_call.1} parent=0
    _
  %s12 = ssub.s32 1, %s10
  %s13 = scalar_select 0, %s12, %s10
  $region1: #{tpu_custom_call.1} parent=0
    #allocation2 [shape = 'u8[131072]{0}', space=vmem, size = 0x20000, scoped, tag = 'input window, operand 3, single buffered']
    #allocation3 [shape = 's32[1]{0}', space=sflag, size = 0x4, scoped, tag = 'scoped memory for tpu_custom_call.1']
    #allocation4 [shape = 's32[1]{0}', space=sflag, size = 0x4, scoped, tag = 'scoped memory for tpu_custom_call.1']
    #allocation5 [shape = 'u8[131072]{0}', space=vmem, size = 0x20000, scoped, tag = 'input window, operand 5, single buffered']
    #allocation6 [shape = 's32[1]{0}', space=sflag, size = 0x4, scoped, tag = 'scoped memory for tpu_custom_call.1']
    #allocation7 [shape = 'u8[4096]{0}', space=vmem, size = 0x1000, scoped, tag = 'output window, operand 0, single buffered']
    %14 = vsyncpa [#allocation3], 0
    %15 = vsyncpa [#allocation6], 0
    %16 = vsyncpa [#allocation4], 0
    // Predicated region
    $region2: #{tpu_custom_call.1} parent=1 // pred_check
      _
    $region3: #{tpu_custom_call.1} parent=1 // pred_check_branch
      %18 = sbr.rel (0) target = $region5
    $region4: #{tpu_custom_call.1} parent=1 // pred_region
      _
    $region5: #{tpu_custom_call.1} parent=1 // pred_fallthru
      _
    // Predicated region
    $region6: #{tpu_custom_call.1} parent=1 // pred_check
      _
    $region7: #{tpu_custom_call.1} parent=1 // pred_check_branch
      %20 = sbr.rel (0) target = $region9
    $region8: #{tpu_custom_call.1} parent=1 // pred_region
      _
    $region9: #{tpu_custom_call.1} parent=1 // pred_fallthru
      _
    // Predicated region
    $region10: #{tpu_custom_call.1} parent=1 // pred_check
      _
    $region11: #{tpu_custom_call.1} parent=1 // pred_check_branch
      %22 = sbr.rel (0) target = $region13
    $region12: #{tpu_custom_call.1} parent=1 // pred_region
      _
    $region13: #{tpu_custom_call.1} parent=1 // pred_fallthru
      _
    // Predicated region
    $region14: #{tpu_custom_call.1} parent=1 // pred_check
      _
    $region15: #{tpu_custom_call.1} parent=1 // pred_check_branch
      %24 = sbr.rel (0) target = $region17
    $region16: #{tpu_custom_call.1} parent=1 // pred_region
      %26 = vsyncadd [#allocation3], 0
      %s27 = sshll.u32 %s3, 4
      %s28 = int_to_ptr.hbm [resolvable:$true] %s27
      %s29 = sshll.u32 [#allocation2], 4
      %s30 = int_to_ptr.vmem [resolvable:$true] %s29
      %35 = dma.hbm_to_vmem [thread:$0]  %s28, 4096, %s30, [#allocation3], 128, 128, 8
    $region17: #{tpu_custom_call.1} parent=1 // pred_fallthru
      _
    // Predicated region
    $region18: #{tpu_custom_call.1} parent=1 // pred_check
      _
    $region19: #{tpu_custom_call.1} parent=1 // pred_check_branch
      %37 = sbr.rel (0) target = $region21
    $region20: #{tpu_custom_call.1} parent=1 // pred_region
      _
    $region21: #{tpu_custom_call.1} parent=1 // pred_fallthru
      _
    // Predicated region
    $region22: #{tpu_custom_call.1} parent=1 // pred_check
      _
    $region23: #{tpu_custom_call.1} parent=1 // pred_check_branch
      %39 = sbr.rel (0) target = $region25
    $region24: #{tpu_custom_call.1} parent=1 // pred_region
      %41 = vsyncadd [#allocation6], 0
      %s42 = sshll.u32 %s5, 4
      %s43 = int_to_ptr.hbm [resolvable:$true] %s42
      %s44 = sshll.u32 [#allocation5], 4
      %s45 = int_to_ptr.vmem [resolvable:$true] %s44
      %50 = dma.hbm_to_vmem [thread:$0]  %s43, 4096, %s45, [#allocation6], 128, 128, 8
    $region25: #{tpu_custom_call.1} parent=1 // pred_fallthru
      _
    // Predicated region
    $region26: #{tpu_custom_call.1} parent=1 // pred_check
      _
    $region27: #{tpu_custom_call.1} parent=1 // pred_check_branch
      %52 = sbr.rel (0) target = $region29
    $region28: #{tpu_custom_call.1} parent=1 // pred_region
      _
    $region29: #{tpu_custom_call.1} parent=1 // pred_fallthru
      _
    // Predicated region
    $region30: #{tpu_custom_call.1} parent=1 // pred_check
      _
    $region31: #{tpu_custom_call.1} parent=1 // pred_check_branch
      %54 = sbr.rel (0) target = $region33
    $region32: #{tpu_custom_call.1} parent=1 // pred_region
      _
    $region33: #{tpu_custom_call.1} parent=1 // pred_fallthru
      _
    // Predicated region
    $region34: #{tpu_custom_call.1} parent=1 // pred_check
      _
    $region35: #{tpu_custom_call.1} parent=1 // pred_check_branch
      %56 = sbr.rel (0) target = $region37
    $region36: #{tpu_custom_call.1} parent=1 // pred_region
      _
    $region37: #{tpu_custom_call.1} parent=1 // pred_fallthru
      _
    // Predicated region
    $region38: #{tpu_custom_call.1} parent=1 // pred_check
      _
    $region39: #{tpu_custom_call.1} parent=1 // pred_check_branch
      %58 = sbr.rel (0) target = $region41
    $region40: #{tpu_custom_call.1} parent=1 // pred_region
      %60 = dma.done [#allocation3], 4096
    $region41: #{tpu_custom_call.1} parent=1 // pred_fallthru
      _
    // Predicated region
    $region42: #{tpu_custom_call.1} parent=1 // pred_check
      _
    $region43: #{tpu_custom_call.1} parent=1 // pred_check_branch
      %62 = sbr.rel (0) target = $region45
    $region44: #{tpu_custom_call.1} parent=1 // pred_region
      %64 = dma.done [#allocation6], 4096
    $region45: #{tpu_custom_call.1} parent=1 // pred_fallthru
      _
    %v65 = vld [vmem:[%s0] sm:$0xf]
    %v66 = vld [vmem:[%s1] sm:$0xff]
    %v67 = vld [vmem:[%s1 + $0x8] sm:$0xff]
    %v68 = vld [vmem:[%s1 + $0x10] sm:$0xff]
    %v69 = vld [vmem:[%s1 + $0x18] sm:$0xff]
    %v70 = vld [vmem:[%s1 + $0x20] sm:$0xff]
    %v71 = vld [vmem:[%s1 + $0x28] sm:$0xff]
    %v72 = vld [vmem:[%s1 + $0x30] sm:$0xff]
    %v73 = vld [vmem:[%s1 + $0x38] sm:$0xff]
    %v74 = vld [vmem:[%s1 + $0x40] sm:$0xff]
    %v75 = vld [vmem:[%s1 + $0x48] sm:$0xff]
    %v76 = vld [vmem:[%s1 + $0x50] sm:$0xff]
    %v77 = vld [vmem:[%s1 + $0x58] sm:$0xff]
    %v78 = vld [vmem:[%s1 + $0x60] sm:$0xff]
    %v79 = vld [vmem:[%s1 + $0x68] sm:$0xff]
    %v80 = vld [vmem:[%s1 + $0x70] sm:$0xff]
    %v81 = vld [vmem:[%s1 + $0x78] sm:$0xff]
    %v82 = vld [vmem:[%s2] sm:$0x3]
    %v84 = vperm.slane %v82, 0
    %v85 = vperm.slane %v82, 1
    %v104 = vunpack.c.l.b16 %v66
    %v105 = vunpack.c.h.b16 %v66
    %v106 = vunpack.c.l.b16 %v67
    %v107 = vunpack.c.h.b16 %v67
    %v108 = vunpack.c.l.b16 %v68
    %v109 = vunpack.c.h.b16 %v68
    %v110 = vunpack.c.l.b16 %v69
    %v111 = vunpack.c.h.b16 %v69
    %v112 = vunpack.c.l.b16 %v70
    %v113 = vunpack.c.h.b16 %v70
    %v114 = vunpack.c.l.b16 %v71
    %v115 = vunpack.c.h.b16 %v71
    %v116 = vunpack.c.l.b16 %v72
    %v117 = vunpack.c.h.b16 %v72
    %v118 = vunpack.c.l.b16 %v73
    %v119 = vunpack.c.h.b16 %v73
    %v120 = vunpack.c.l.b16 %v74
    %v121 = vunpack.c.h.b16 %v74
    %v122 = vunpack.c.l.b16 %v75
    %v123 = vunpack.c.h.b16 %v75
    %v124 = vunpack.c.l.b16 %v76
    %v125 = vunpack.c.h.b16 %v76
    %v126 = vunpack.c.l.b16 %v77
    %v127 = vunpack.c.h.b16 %v77
    %v128 = vunpack.c.l.b16 %v78
    %v129 = vunpack.c.h.b16 %v78
    %v130 = vunpack.c.l.b16 %v79
    %v131 = vunpack.c.h.b16 %v79
    %v132 = vunpack.c.l.b16 %v80
    %v133 = vunpack.c.h.b16 %v80
    %v134 = vunpack.c.l.b16 %v81
    %v135 = vunpack.c.h.b16 %v81
    %v136 = vpack.c.b16 %v106, %v104
    %v137 = vpack.c.b16 %v107, %v105
    %v138 = vpack.c.b16 %v110, %v108
    %v139 = vpack.c.b16 %v111, %v109
    %v140 = vpack.c.b16 %v114, %v112
    %v141 = vpack.c.b16 %v115, %v113
    %v142 = vpack.c.b16 %v118, %v116
    %v143 = vpack.c.b16 %v119, %v117
    %v144 = vpack.c.b16 %v122, %v120
    %v145 = vpack.c.b16 %v123, %v121
    %v146 = vpack.c.b16 %v126, %v124
    %v147 = vpack.c.b16 %v127, %v125
    %v148 = vpack.c.b16 %v130, %v128
    %v149 = vpack.c.b16 %v131, %v129
    %v150 = vpack.c.b16 %v134, %v132
    %v151 = vpack.c.b16 %v135, %v133
    %168 = vmatpush.bf16.msra.mxu0 %v150
    %169 = vmatpush.bf16.msra.mxu0 %v148
    %170 = vmatpush.bf16.msra.mxu0 %v146
    %171 = vmatpush.bf16.msra.mxu0 %v144
    %172 = vmatpush.bf16.msra.mxu0 %v142
    %173 = vmatpush.bf16.msra.mxu0 %v140
    %174 = vmatpush.bf16.msra.mxu0 %v138
    %175 = vmatpush.bf16.msra.mxu0 %v136
    %176 = vmatmul.bf16.gmra.mxu0 %v65
    %v177 = vpop.f32.mrf.mxu0
    %v178 = vadd.f32 %v84, %v177
    %v179 = vpop.f32.mrf.mxu0
    %180 = vdwg.mxu0
    %181 = vmatpush.bf16.msra.mxu0 %v151
    %182 = vmatpush.bf16.msra.mxu0 %v149
    %183 = vmatpush.bf16.msra.mxu0 %v147
    %184 = vmatpush.bf16.msra.mxu0 %v145
    %185 = vmatpush.bf16.msra.mxu0 %v143
    %186 = vmatpush.bf16.msra.mxu0 %v141
    %187 = vmatpush.bf16.msra.mxu0 %v139
    %188 = vmatpush.bf16.msra.mxu0 %v137
    %189 = vmatmul.bf16.gmra.mxu0 %v65
    %v190 = vpop.f32.mrf.mxu0
    %v191 = vadd.f32 %v85, %v190
    %v192 = vpop.f32.mrf.mxu0
    %193 = vdwg.mxu0
    %vm194 = vcmp.gt.f32.partialorder %v178, 0.0
    %vm195 = vcmp.gt.f32.partialorder %v191, 0.0
    %v196 = vmul.f32 %v178, 0.2
    %v197 = vmul.f32 %v191, 0.2
    %v198 = vsel %vm194, %v178, %v196
    %v199 = vsel %vm195, %v191, %v197
    %v200 = vpack.c.bf16 %v198, %v198
    %v201 = vpack.c.bf16 %v199, %v199
    %v202 = vld [vmem:[#allocation2] sm:$0xff]
    %v203 = vld [vmem:[#allocation2 + $0x8] sm:$0xff]
    %v204 = vld [vmem:[#allocation2 + $0x10] sm:$0xff]
    %v205 = vld [vmem:[#allocation2 + $0x18] sm:$0xff]
    %v206 = vld [vmem:[#allocation2 + $0x20] sm:$0xff]
    %v207 = vld [vmem:[#allocation2 + $0x28] sm:$0xff]
    %v208 = vld [vmem:[#allocation2 + $0x30] sm:$0xff]
    %v209 = vld [vmem:[#allocation2 + $0x38] sm:$0xff]
    %v210 = vld [vmem:[#allocation2 + $0x40] sm:$0xff]
    %v211 = vld [vmem:[#allocation2 + $0x48] sm:$0xff]
    %v212 = vld [vmem:[#allocation2 + $0x50] sm:$0xff]
    %v213 = vld [vmem:[#allocation2 + $0x58] sm:$0xff]
    %v214 = vld [vmem:[#allocation2 + $0x60] sm:$0xff]
    %v215 = vld [vmem:[#allocation2 + $0x68] sm:$0xff]
    %v216 = vld [vmem:[#allocation2 + $0x70] sm:$0xff]
    %v217 = vld [vmem:[#allocation2 + $0x78] sm:$0xff]
    %v218 = vld [vmem:[#allocation2 + $0x80] sm:$0xff]
    %v219 = vld [vmem:[#allocation2 + $0x88] sm:$0xff]
    %v220 = vld [vmem:[#allocation2 + $0x90] sm:$0xff]
    %v221 = vld [vmem:[#allocation2 + $0x98] sm:$0xff]
    %v222 = vld [vmem:[#allocation2 + $0xa0] sm:$0xff]
    %v223 = vld [vmem:[#allocation2 + $0xa8] sm:$0xff]
    %v224 = vld [vmem:[#allocation2 + $0xb0] sm:$0xff]
    %v225 = vld [vmem:[#allocation2 + $0xb8] sm:$0xff]
    %v226 = vld [vmem:[#allocation2 + $0xc0] sm:$0xff]
    %v227 = vld [vmem:[#allocation2 + $0xc8] sm:$0xff]
    %v228 = vld [vmem:[#allocation2 + $0xd0] sm:$0xff]
    %v229 = vld [vmem:[#allocation2 + $0xd8] sm:$0xff]
    %v230 = vld [vmem:[#allocation2 + $0xe0] sm:$0xff]
    %v231 = vld [vmem:[#allocation2 + $0xe8] sm:$0xff]
    %v232 = vld [vmem:[#allocation2 + $0xf0] sm:$0xff]
    %v233 = vld [vmem:[#allocation2 + $0xf8] sm:$0xff]
    %v234 = vld [vmem:[%s4] sm:$0x3]
    %v236 = vperm.slane %v234, 0
    %v237 = vperm.slane %v234, 1
    %v272 = vunpack.c.l.b16 %v202
    %v273 = vunpack.c.h.b16 %v202
    %v274 = vunpack.c.l.b16 %v203
    %v275 = vunpack.c.h.b16 %v203
    %v276 = vunpack.c.l.b16 %v204
    %v277 = vunpack.c.h.b16 %v204
    %v278 = vunpack.c.l.b16 %v205
    %v279 = vunpack.c.h.b16 %v205
    %v280 = vunpack.c.l.b16 %v206
    %v281 = vunpack.c.h.b16 %v206
    %v282 = vunpack.c.l.b16 %v207
    %v283 = vunpack.c.h.b16 %v207
    %v284 = vunpack.c.l.b16 %v208
    %v285 = vunpack.c.h.b16 %v208
    %v286 = vunpack.c.l.b16 %v209
    %v287 = vunpack.c.h.b16 %v209
    %v288 = vunpack.c.l.b16 %v210
    %v289 = vunpack.c.h.b16 %v210
    %v290 = vunpack.c.l.b16 %v211
    %v291 = vunpack.c.h.b16 %v211
    %v292 = vunpack.c.l.b16 %v212
    %v293 = vunpack.c.h.b16 %v212
    %v294 = vunpack.c.l.b16 %v213
    %v295 = vunpack.c.h.b16 %v213
    %v296 = vunpack.c.l.b16 %v214
    %v297 = vunpack.c.h.b16 %v214
    %v298 = vunpack.c.l.b16 %v215
    %v299 = vunpack.c.h.b16 %v215
    %v300 = vunpack.c.l.b16 %v216
    %v301 = vunpack.c.h.b16 %v216
    %v302 = vunpack.c.l.b16 %v217
    %v303 = vunpack.c.h.b16 %v217
    %v304 = vunpack.c.l.b16 %v218
    %v305 = vunpack.c.h.b16 %v218
    %v306 = vunpack.c.l.b16 %v219
    %v307 = vunpack.c.h.b16 %v219
    %v308 = vunpack.c.l.b16 %v220
    %v309 = vunpack.c.h.b16 %v220
    %v310 = vunpack.c.l.b16 %v221
    %v311 = vunpack.c.h.b16 %v221
    %v312 = vunpack.c.l.b16 %v222
    %v313 = vunpack.c.h.b16 %v222
    %v314 = vunpack.c.l.b16 %v223
    %v315 = vunpack.c.h.b16 %v223
    %v316 = vunpack.c.l.b16 %v224
    %v317 = vunpack.c.h.b16 %v224
    %v318 = vunpack.c.l.b16 %v225
    %v319 = vunpack.c.h.b16 %v225
    %v320 = vunpack.c.l.b16 %v226
    %v321 = vunpack.c.h.b16 %v226
    %v322 = vunpack.c.l.b16 %v227
    %v323 = vunpack.c.h.b16 %v227
    %v324 = vunpack.c.l.b16 %v228
    %v325 = vunpack.c.h.b16 %v228
    %v326 = vunpack.c.l.b16 %v229
    %v327 = vunpack.c.h.b16 %v229
    %v328 = vunpack.c.l.b16 %v230
    %v329 = vunpack.c.h.b16 %v230
    %v330 = vunpack.c.l.b16 %v231
    %v331 = vunpack.c.h.b16 %v231
    %v332 = vunpack.c.l.b16 %v232
    %v333 = vunpack.c.h.b16 %v232
    %v334 = vunpack.c.l.b16 %v233
    %v335 = vunpack.c.h.b16 %v233
    %v336 = vpack.c.b16 %v274, %v272
    %v337 = vpack.c.b16 %v275, %v273
    %v338 = vpack.c.b16 %v278, %v276
    %v339 = vpack.c.b16 %v279, %v277
    %v340 = vpack.c.b16 %v282, %v280
    %v341 = vpack.c.b16 %v283, %v281
    %v342 = vpack.c.b16 %v286, %v284
    %v343 = vpack.c.b16 %v287, %v285
    %v344 = vpack.c.b16 %v290, %v288
    %v345 = vpack.c.b16 %v291, %v289
    %v346 = vpack.c.b16 %v294, %v292
    %v347 = vpack.c.b16 %v295, %v293
    %v348 = vpack.c.b16 %v298, %v296
    %v349 = vpack.c.b16 %v299, %v297
    %v350 = vpack.c.b16 %v302, %v300
    %v351 = vpack.c.b16 %v303, %v301
    %v352 = vpack.c.b16 %v306, %v304
    %v353 = vpack.c.b16 %v307, %v305
    %v354 = vpack.c.b16 %v310, %v308
    %v355 = vpack.c.b16 %v311, %v309
    %v356 = vpack.c.b16 %v314, %v312
    %v357 = vpack.c.b16 %v315, %v313
    %v358 = vpack.c.b16 %v318, %v316
    %v359 = vpack.c.b16 %v319, %v317
    %v360 = vpack.c.b16 %v322, %v320
    %v361 = vpack.c.b16 %v323, %v321
    %v362 = vpack.c.b16 %v326, %v324
    %v363 = vpack.c.b16 %v327, %v325
    %v364 = vpack.c.b16 %v330, %v328
    %v365 = vpack.c.b16 %v331, %v329
    %v366 = vpack.c.b16 %v334, %v332
    %v367 = vpack.c.b16 %v335, %v333
    %400 = vmatpush.bf16.msra.mxu0 %v350
    %401 = vmatpush.bf16.msra.mxu0 %v348
    %402 = vmatpush.bf16.msra.mxu0 %v346
    %403 = vmatpush.bf16.msra.mxu0 %v344
    %404 = vmatpush.bf16.msra.mxu0 %v342
    %405 = vmatpush.bf16.msra.mxu0 %v340
    %406 = vmatpush.bf16.msra.mxu0 %v338
    %407 = vmatpush.bf16.msra.mxu0 %v336
    %408 = vmatmul.bf16.gmra.mxu0 %v200
    %v409 = vpop.f32.mrf.mxu0
    %v410 = vadd.f32 %v236, %v409
    %v411 = vpop.f32.mrf.mxu0
    %412 = vdwg.mxu0
    %413 = vmatpush.bf16.msra.mxu0 %v366
    %414 = vmatpush.bf16.msra.mxu0 %v364
    %415 = vmatpush.bf16.msra.mxu0 %v362
    %416 = vmatpush.bf16.msra.mxu0 %v360
    %417 = vmatpush.bf16.msra.mxu0 %v358
    %418 = vmatpush.bf16.msra.mxu0 %v356
    %419 = vmatpush.bf16.msra.mxu0 %v354
    %420 = vmatpush.bf16.msra.mxu0 %v352
    %421 = vmatmul.bf16.gmra.mxu0 %v201
    %v422 = vpop.f32.mrf.mxu0
    %v423 = vadd.f32 %v410, %v422
    %v424 = vpop.f32.mrf.mxu0
    %425 = vdwg.mxu0
    %426 = vmatpush.bf16.msra.mxu0 %v351
    %427 = vmatpush.bf16.msra.mxu0 %v349
    %428 = vmatpush.bf16.msra.mxu0 %v347
    %429 = vmatpush.bf16.msra.mxu0 %v345
    %430 = vmatpush.bf16.msra.mxu0 %v343
    %431 = vmatpush.bf16.msra.mxu0 %v341
    %432 = vmatpush.bf16.msra.mxu0 %v339
    %433 = vmatpush.bf16.msra.mxu0 %v337
    %434 = vmatmul.bf16.gmra.mxu0 %v200
    %v435 = vpop.f32.mrf.mxu0
    %v436 = vadd.f32 %v237, %v435
    %v437 = vpop.f32.mrf.mxu0
    %438 = vdwg.mxu0
    %439 = vmatpush.bf16.msra.mxu0 %v367
    %440 = vmatpush.bf16.msra.mxu0 %v365
    %441 = vmatpush.bf16.msra.mxu0 %v363
    %442 = vmatpush.bf16.msra.mxu0 %v361
    %443 = vmatpush.bf16.msra.mxu0 %v359
    %444 = vmatpush.bf16.msra.mxu0 %v357
    %445 = vmatpush.bf16.msra.mxu0 %v355
    %446 = vmatpush.bf16.msra.mxu0 %v353
    %447 = vmatmul.bf16.gmra.mxu0 %v201
    %v448 = vpop.f32.mrf.mxu0
    %v449 = vadd.f32 %v436, %v448
    %v450 = vpop.f32.mrf.mxu0
    %451 = vdwg.mxu0
    %vm452 = vcmp.gt.f32.partialorder %v423, 0.0
    %vm453 = vcmp.gt.f32.partialorder %v449, 0.0
    %v454 = vmul.f32 %v423, 0.2
    %v455 = vmul.f32 %v449, 0.2
    %v456 = vsel %vm452, %v423, %v454
    %v457 = vsel %vm453, %v449, %v455
    %v458 = vpack.c.bf16 %v456, %v456
    %v459 = vpack.c.bf16 %v457, %v457
    %v460 = vld [vmem:[#allocation5] sm:$0xff]
    %v461 = vld [vmem:[#allocation5 + $0x8] sm:$0xff]
    %v462 = vld [vmem:[#allocation5 + $0x10] sm:$0xff]
    %v463 = vld [vmem:[#allocation5 + $0x18] sm:$0xff]
    %v464 = vld [vmem:[#allocation5 + $0x20] sm:$0xff]
    %v465 = vld [vmem:[#allocation5 + $0x28] sm:$0xff]
    %v466 = vld [vmem:[#allocation5 + $0x30] sm:$0xff]
    %v467 = vld [vmem:[#allocation5 + $0x38] sm:$0xff]
    %v468 = vld [vmem:[#allocation5 + $0x40] sm:$0xff]
    %v469 = vld [vmem:[#allocation5 + $0x48] sm:$0xff]
    %v470 = vld [vmem:[#allocation5 + $0x50] sm:$0xff]
    %v471 = vld [vmem:[#allocation5 + $0x58] sm:$0xff]
    %v472 = vld [vmem:[#allocation5 + $0x60] sm:$0xff]
    %v473 = vld [vmem:[#allocation5 + $0x68] sm:$0xff]
    %v474 = vld [vmem:[#allocation5 + $0x70] sm:$0xff]
    %v475 = vld [vmem:[#allocation5 + $0x78] sm:$0xff]
    %v476 = vld [vmem:[#allocation5 + $0x80] sm:$0xff]
    %v477 = vld [vmem:[#allocation5 + $0x88] sm:$0xff]
    %v478 = vld [vmem:[#allocation5 + $0x90] sm:$0xff]
    %v479 = vld [vmem:[#allocation5 + $0x98] sm:$0xff]
    %v480 = vld [vmem:[#allocation5 + $0xa0] sm:$0xff]
    %v481 = vld [vmem:[#allocation5 + $0xa8] sm:$0xff]
    %v482 = vld [vmem:[#allocation5 + $0xb0] sm:$0xff]
    %v483 = vld [vmem:[#allocation5 + $0xb8] sm:$0xff]
    %v484 = vld [vmem:[#allocation5 + $0xc0] sm:$0xff]
    %v485 = vld [vmem:[#allocation5 + $0xc8] sm:$0xff]
    %v486 = vld [vmem:[#allocation5 + $0xd0] sm:$0xff]
    %v487 = vld [vmem:[#allocation5 + $0xd8] sm:$0xff]
    %v488 = vld [vmem:[#allocation5 + $0xe0] sm:$0xff]
    %v489 = vld [vmem:[#allocation5 + $0xe8] sm:$0xff]
    %v490 = vld [vmem:[#allocation5 + $0xf0] sm:$0xff]
    %v491 = vld [vmem:[#allocation5 + $0xf8] sm:$0xff]
    %v492 = vld [vmem:[%s6] sm:$0x3]
    %v494 = vperm.slane %v492, 0
    %v495 = vperm.slane %v492, 1
    %v530 = vunpack.c.l.b16 %v460
    %v531 = vunpack.c.h.b16 %v460
    %v532 = vunpack.c.l.b16 %v461
    %v533 = vunpack.c.h.b16 %v461
    %v534 = vunpack.c.l.b16 %v462
    %v535 = vunpack.c.h.b16 %v462
    %v536 = vunpack.c.l.b16 %v463
    %v537 = vunpack.c.h.b16 %v463
    %v538 = vunpack.c.l.b16 %v464
    %v539 = vunpack.c.h.b16 %v464
    %v540 = vunpack.c.l.b16 %v465
    %v541 = vunpack.c.h.b16 %v465
    %v542 = vunpack.c.l.b16 %v466
    %v543 = vunpack.c.h.b16 %v466
    %v544 = vunpack.c.l.b16 %v467
    %v545 = vunpack.c.h.b16 %v467
    %v546 = vunpack.c.l.b16 %v468
    %v547 = vunpack.c.h.b16 %v468
    %v548 = vunpack.c.l.b16 %v469
    %v549 = vunpack.c.h.b16 %v469
    %v550 = vunpack.c.l.b16 %v470
    %v551 = vunpack.c.h.b16 %v470
    %v552 = vunpack.c.l.b16 %v471
    %v553 = vunpack.c.h.b16 %v471
    %v554 = vunpack.c.l.b16 %v472
    %v555 = vunpack.c.h.b16 %v472
    %v556 = vunpack.c.l.b16 %v473
    %v557 = vunpack.c.h.b16 %v473
    %v558 = vunpack.c.l.b16 %v474
    %v559 = vunpack.c.h.b16 %v474
    %v560 = vunpack.c.l.b16 %v475
    %v561 = vunpack.c.h.b16 %v475
    %v562 = vunpack.c.l.b16 %v476
    %v563 = vunpack.c.h.b16 %v476
    %v564 = vunpack.c.l.b16 %v477
    %v565 = vunpack.c.h.b16 %v477
    %v566 = vunpack.c.l.b16 %v478
    %v567 = vunpack.c.h.b16 %v478
    %v568 = vunpack.c.l.b16 %v479
    %v569 = vunpack.c.h.b16 %v479
    %v570 = vunpack.c.l.b16 %v480
    %v571 = vunpack.c.h.b16 %v480
    %v572 = vunpack.c.l.b16 %v481
    %v573 = vunpack.c.h.b16 %v481
    %v574 = vunpack.c.l.b16 %v482
    %v575 = vunpack.c.h.b16 %v482
    %v576 = vunpack.c.l.b16 %v483
    %v577 = vunpack.c.h.b16 %v483
    %v578 = vunpack.c.l.b16 %v484
    %v579 = vunpack.c.h.b16 %v484
    %v580 = vunpack.c.l.b16 %v485
    %v581 = vunpack.c.h.b16 %v485
    %v582 = vunpack.c.l.b16 %v486
    %v583 = vunpack.c.h.b16 %v486
    %v584 = vunpack.c.l.b16 %v487
    %v585 = vunpack.c.h.b16 %v487
    %v586 = vunpack.c.l.b16 %v488
    %v587 = vunpack.c.h.b16 %v488
    %v588 = vunpack.c.l.b16 %v489
    %v589 = vunpack.c.h.b16 %v489
    %v590 = vunpack.c.l.b16 %v490
    %v591 = vunpack.c.h.b16 %v490
    %v592 = vunpack.c.l.b16 %v491
    %v593 = vunpack.c.h.b16 %v491
    %v594 = vpack.c.b16 %v532, %v530
    %v595 = vpack.c.b16 %v533, %v531
    %v596 = vpack.c.b16 %v536, %v534
    %v597 = vpack.c.b16 %v537, %v535
    %v598 = vpack.c.b16 %v540, %v538
    %v599 = vpack.c.b16 %v541, %v539
    %v600 = vpack.c.b16 %v544, %v542
    %v601 = vpack.c.b16 %v545, %v543
    %v602 = vpack.c.b16 %v548, %v546
    %v603 = vpack.c.b16 %v549, %v547
    %v604 = vpack.c.b16 %v552, %v550
    %v605 = vpack.c.b16 %v553, %v551
    %v606 = vpack.c.b16 %v556, %v554
    %v607 = vpack.c.b16 %v557, %v555
    %v608 = vpack.c.b16 %v560, %v558
    %v609 = vpack.c.b16 %v561, %v559
    %v610 = vpack.c.b16 %v564, %v562
    %v611 = vpack.c.b16 %v565, %v563
    %v612 = vpack.c.b16 %v568, %v566
    %v613 = vpack.c.b16 %v569, %v567
    %v614 = vpack.c.b16 %v572, %v570
    %v615 = vpack.c.b16 %v573, %v571
    %v616 = vpack.c.b16 %v576, %v574
    %v617 = vpack.c.b16 %v577, %v575
    %v618 = vpack.c.b16 %v580, %v578
    %v619 = vpack.c.b16 %v581, %v579
    %v620 = vpack.c.b16 %v584, %v582
    %v621 = vpack.c.b16 %v585, %v583
    %v622 = vpack.c.b16 %v588, %v586
    %v623 = vpack.c.b16 %v589, %v587
    %v624 = vpack.c.b16 %v592, %v590
    %v625 = vpack.c.b16 %v593, %v591
    %658 = vmatpush.bf16.msra.mxu0 %v608
    %659 = vmatpush.bf16.msra.mxu0 %v606
    %660 = vmatpush.bf16.msra.mxu0 %v604
    %661 = vmatpush.bf16.msra.mxu0 %v602
    %662 = vmatpush.bf16.msra.mxu0 %v600
    %663 = vmatpush.bf16.msra.mxu0 %v598
    %664 = vmatpush.bf16.msra.mxu0 %v596
    %665 = vmatpush.bf16.msra.mxu0 %v594
    %666 = vmatmul.bf16.gmra.mxu0 %v458
    %v667 = vpop.f32.mrf.mxu0
    %v668 = vadd.f32 %v494, %v667
    %v669 = vpop.f32.mrf.mxu0
    %670 = vdwg.mxu0
    %671 = vmatpush.bf16.msra.mxu0 %v624
    %672 = vmatpush.bf16.msra.mxu0 %v622
    %673 = vmatpush.bf16.msra.mxu0 %v620
    %674 = vmatpush.bf16.msra.mxu0 %v618
    %675 = vmatpush.bf16.msra.mxu0 %v616
    %676 = vmatpush.bf16.msra.mxu0 %v614
    %677 = vmatpush.bf16.msra.mxu0 %v612
    %678 = vmatpush.bf16.msra.mxu0 %v610
    %679 = vmatmul.bf16.gmra.mxu0 %v459
    %v680 = vpop.f32.mrf.mxu0
    %v681 = vadd.f32 %v668, %v680
    %v682 = vpop.f32.mrf.mxu0
    %683 = vdwg.mxu0
    %684 = vmatpush.bf16.msra.mxu0 %v609
    %685 = vmatpush.bf16.msra.mxu0 %v607
    %686 = vmatpush.bf16.msra.mxu0 %v605
    %687 = vmatpush.bf16.msra.mxu0 %v603
    %688 = vmatpush.bf16.msra.mxu0 %v601
    %689 = vmatpush.bf16.msra.mxu0 %v599
    %690 = vmatpush.bf16.msra.mxu0 %v597
    %691 = vmatpush.bf16.msra.mxu0 %v595
    %692 = vmatmul.bf16.gmra.mxu0 %v458
    %v693 = vpop.f32.mrf.mxu0
    %v694 = vadd.f32 %v495, %v693
    %v695 = vpop.f32.mrf.mxu0
    %696 = vdwg.mxu0
    %697 = vmatpush.bf16.msra.mxu0 %v625
    %698 = vmatpush.bf16.msra.mxu0 %v623
    %699 = vmatpush.bf16.msra.mxu0 %v621
    %700 = vmatpush.bf16.msra.mxu0 %v619
    %701 = vmatpush.bf16.msra.mxu0 %v617
    %702 = vmatpush.bf16.msra.mxu0 %v615
    %703 = vmatpush.bf16.msra.mxu0 %v613
    %704 = vmatpush.bf16.msra.mxu0 %v611
    %705 = vmatmul.bf16.gmra.mxu0 %v459
    %v706 = vpop.f32.mrf.mxu0
    %v707 = vadd.f32 %v694, %v706
    %v708 = vpop.f32.mrf.mxu0
    %709 = vdwg.mxu0
    %vm710 = vcmp.gt.f32.partialorder %v681, 0.0
    %vm711 = vcmp.gt.f32.partialorder %v707, 0.0
    %v712 = vmul.f32 %v681, 0.2
    %v713 = vmul.f32 %v707, 0.2
    %v714 = vsel %vm710, %v681, %v712
    %v715 = vsel %vm711, %v707, %v713
    %v716 = vpack.c.bf16 %v714, %v714
    %v717 = vpack.c.bf16 %v715, %v715
    %v718 = vld [vmem:[%s7] sm:$0xf]
    %v719 = vld [vmem:[%s7 + $0x4] sm:$0xf]
    %v720 = vld [vmem:[%s7 + $0x8] sm:$0xf]
    %v721 = vld [vmem:[%s7 + $0xc] sm:$0xf]
    %v722 = vld [vmem:[%s7 + $0x10] sm:$0xf]
    %v723 = vld [vmem:[%s7 + $0x14] sm:$0xf]
    %v724 = vld [vmem:[%s7 + $0x18] sm:$0xf]
    %v725 = vld [vmem:[%s7 + $0x1c] sm:$0xf]
    %v726 = vld [vmem:[%s7 + $0x20] sm:$0xf]
    %v727 = vld [vmem:[%s7 + $0x24] sm:$0xf]
    %v728 = vld [vmem:[%s7 + $0x28] sm:$0xf]
    %v729 = vld [vmem:[%s7 + $0x2c] sm:$0xf]
    %v730 = vld [vmem:[%s7 + $0x30] sm:$0xf]
    %v731 = vld [vmem:[%s7 + $0x34] sm:$0xf]
    %v732 = vld [vmem:[%s7 + $0x38] sm:$0xf]
    %v733 = vld [vmem:[%s7 + $0x3c] sm:$0xf]
    %v734 = vld [vmem:[%s7 + $0x40] sm:$0xf]
    %v735 = vld [vmem:[%s7 + $0x44] sm:$0xf]
    %v736 = vld [vmem:[%s7 + $0x48] sm:$0xf]
    %v737 = vld [vmem:[%s7 + $0x4c] sm:$0xf]
    %v738 = vld [vmem:[%s7 + $0x50] sm:$0xf]
    %v739 = vld [vmem:[%s7 + $0x54] sm:$0xf]
    %v740 = vld [vmem:[%s7 + $0x58] sm:$0xf]
    %v741 = vld [vmem:[%s7 + $0x5c] sm:$0xf]
    %v742 = vld [vmem:[%s7 + $0x60] sm:$0xf]
    %v743 = vld [vmem:[%s7 + $0x64] sm:$0xf]
    %v744 = vld [vmem:[%s7 + $0x68] sm:$0xf]
    %v745 = vld [vmem:[%s7 + $0x6c] sm:$0xf]
    %v746 = vld [vmem:[%s7 + $0x70] sm:$0xf]
    %v747 = vld [vmem:[%s7 + $0x74] sm:$0xf]
    %v748 = vld [vmem:[%s7 + $0x78] sm:$0xf]
    %v749 = vld [vmem:[%s7 + $0x7c] sm:$0xf]
    %v750 = vld [vmem:[%s8] sm:$0x1]
    %v752 = vperm.slane %v750, 0
    %v786 = vunpack.c.l.b16 %v718
    %v787 = vunpack.c.l.b16 %v719
    %v788 = vunpack.c.l.b16 %v720
    %v789 = vunpack.c.l.b16 %v721
    %v790 = vunpack.c.l.b16 %v722
    %v791 = vunpack.c.l.b16 %v723
    %v792 = vunpack.c.l.b16 %v724
    %v793 = vunpack.c.l.b16 %v725
    %v794 = vunpack.c.l.b16 %v726
    %v795 = vunpack.c.l.b16 %v727
    %v796 = vunpack.c.l.b16 %v728
    %v797 = vunpack.c.l.b16 %v729
    %v798 = vunpack.c.l.b16 %v730
    %v799 = vunpack.c.l.b16 %v731
    %v800 = vunpack.c.l.b16 %v732
    %v801 = vunpack.c.l.b16 %v733
    %v802 = vunpack.c.l.b16 %v734
    %v803 = vunpack.c.l.b16 %v735
    %v804 = vunpack.c.l.b16 %v736
    %v805 = vunpack.c.l.b16 %v737
    %v806 = vunpack.c.l.b16 %v738
    %v807 = vunpack.c.l.b16 %v739
    %v808 = vunpack.c.l.b16 %v740
    %v809 = vunpack.c.l.b16 %v741
    %v810 = vunpack.c.l.b16 %v742
    %v811 = vunpack.c.l.b16 %v743
    %v812 = vunpack.c.l.b16 %v744
    %v813 = vunpack.c.l.b16 %v745
    %v814 = vunpack.c.l.b16 %v746
    %v815 = vunpack.c.l.b16 %v747
    %v816 = vunpack.c.l.b16 %v748
    %v817 = vunpack.c.l.b16 %v749
    %v818 = vpack.c.b16 %v787, %v786
    %v819 = vpack.c.b16 %v789, %v788
    %v820 = vpack.c.b16 %v791, %v790
    %v821 = vpack.c.b16 %v793, %v792
    %v822 = vpack.c.b16 %v795, %v794
    %v823 = vpack.c.b16 %v797, %v796
    %v824 = vpack.c.b16 %v799, %v798
    %v825 = vpack.c.b16 %v801, %v800
    %v826 = vpack.c.b16 %v803, %v802
    %v827 = vpack.c.b16 %v805, %v804
    %v828 = vpack.c.b16 %v807, %v806
    %v829 = vpack.c.b16 %v809, %v808
    %v830 = vpack.c.b16 %v811, %v810
    %v831 = vpack.c.b16 %v813, %v812
    %v832 = vpack.c.b16 %v815, %v814
    %v833 = vpack.c.b16 %v817, %v816
    %850 = vmatpush.bf16.msra.mxu0 %v825
    %851 = vmatpush.bf16.msra.mxu0 %v824
    %852 = vmatpush.bf16.msra.mxu0 %v823
    %853 = vmatpush.bf16.msra.mxu0 %v822
    %854 = vmatpush.bf16.msra.mxu0 %v821
    %855 = vmatpush.bf16.msra.mxu0 %v820
    %856 = vmatpush.bf16.msra.mxu0 %v819
    %857 = vmatpush.bf16.msra.mxu0 %v818
    %858 = vmatmul.bf16.gmra.mxu0 %v716
    %v859 = vpop.f32.mrf.mxu0
    %v860 = vadd.f32 %v752, %v859
    %v861 = vpop.f32.mrf.mxu0
    %862 = vdwg.mxu0
    %863 = vmatpush.bf16.msra.mxu0 %v833
    %864 = vmatpush.bf16.msra.mxu0 %v832
    %865 = vmatpush.bf16.msra.mxu0 %v831
    %866 = vmatpush.bf16.msra.mxu0 %v830
    %867 = vmatpush.bf16.msra.mxu0 %v829
    %868 = vmatpush.bf16.msra.mxu0 %v828
    %869 = vmatpush.bf16.msra.mxu0 %v827
    %870 = vmatpush.bf16.msra.mxu0 %v826
    %871 = vmatmul.bf16.gmra.mxu0 %v717
    %v872 = vpop.f32.mrf.mxu0
    %v873 = vadd.f32 %v860, %v872
    %v874 = vpop.f32.mrf.mxu0
    %875 = vdwg.mxu0
    %vm876 = vcmask 64512
    %877 = vst.msk [vmem:[#allocation7] sm:$0xff] %vm876, %v873
    // Predicated region
    $region46: #{tpu_custom_call.1} parent=1 // pred_check
      _
    $region47: #{tpu_custom_call.1} parent=1 // pred_check_branch
      %879 = sbr.rel (0) target = $region49
    $region48: #{tpu_custom_call.1} parent=1 // pred_region
      %881 = vsyncadd [#allocation4], 0
      %s883 = sshll.u32 [#allocation7], 4
      %s884 = int_to_ptr.vmem [resolvable:$true] %s883
      %s885 = sshll.u32 %s9, 4
      %s886 = int_to_ptr.hbm [resolvable:$true] %s885
      %888 = dma.vmem_to_hbm [thread:$0]  %s884, 128, %s886, [#allocation4]
    $region49: #{tpu_custom_call.1} parent=1 // pred_fallthru
      _
    // Predicated region
    $region50: #{tpu_custom_call.1} parent=1 // pred_check
      _
    $region51: #{tpu_custom_call.1} parent=1 // pred_check_branch
      %890 = sbr.rel (0) target = $region53
    $region52: #{tpu_custom_call.1} parent=1 // pred_region
      %892 = dma.done [#allocation4], 128
    $region53: #{tpu_custom_call.1} parent=1 // pred_fallthru
      _
    %893 = vsyncpa [#allocation3], 1
    %894 = vsyncpa [#allocation6], 1
    %895 = vsyncpa [#allocation4], 1

</llo_original>
